<compile_context>
chip_gen: v5e
topology: v5e:2x2
jax: 0.10.0
libtpu: 0.0.40
codegen_flags: <defaults>
</compile_context>

<pallas_src>
import functools
import math

import jax
import jax.numpy as jnp
from jax import lax
from jax.experimental import pallas as pl
from jax.experimental.pallas import tpu as pltpu

DIM = 128
NEG = -1000000000.0
LN_EPS = 1e-5
INV_SQRT2 = 1.0 / math.sqrt(2.0)
SQRT_2_OVER_PI = math.sqrt(2.0 / math.pi)

try:
    # Single-buffer the grid-invariant weights/biases (constant index_map -> no
    # re-DMA anyway; this just drops the second VMEM buffer).
    _CONST_PIPELINE_KW = {"pipeline_mode": pl.Buffered(1)}
except Exception:  # pragma: no cover - older jax without Buffered/pipeline_mode
    _CONST_PIPELINE_KW = {}


def _gelu(x, approx):
    if approx:
        # tanh approximation -> EUP slot (VALU otherwise binds on v6e/v7x);
        # ~1e-3 off PyTorch's exact-erf default.
        return 0.5 * x * (1.0 + jnp.tanh(SQRT_2_OVER_PI * (x + 0.044715 * x * x * x)))
    # PyTorch nn.GELU() default = exact erf-based GELU.
    return 0.5 * x * (1.0 + lax.erf(x * INV_SQRT2))


def _decoder_block_kernel(
    x_ref,       # (TB, S, D)  f32
    wqkv_ref,    # (D, 3D)     compute_dtype  [Wq | Wk | Wv] (in, out) layout
    wo_ref,      # (D, D)      compute_dtype
    w1_ref,      # (D, D)      compute_dtype
    w2_ref,      # (D, D)      compute_dtype
    bqkv_ref,    # (1, 3D)     f32   [bq | bk | bv]
    vec_ref,     # (5, D)      f32   rows: [bo, ln_gamma, ln_beta, b1, b2]
    out_ref,     # (TB, S, D)  f32
    *scratch,    # flash path only: k_scr, v_scr (TB, S, D) compute_dtype
    kv_tile,     # None -> monolithic scores; int -> flash KV-tile size
    approx_gelu,
    compute_dtype,
):
    TB, S, D = x_ref.shape
    fast = compute_dtype == jnp.bfloat16
    prec = None if fast else lax.Precision.HIGHEST
    recip = (lambda u: pl.reciprocal(u, approx=True)) if fast else (lambda u: 1.0 / u)

    x = x_ref[...]                          # (TB, S, D) f32
    x2 = x.reshape(TB * S, D)               # fill MXU M dimension with TB*S rows

    vec = vec_ref[...]                      # (5, D)
    bo = vec[0:1, :]
    gamma = vec[1:2, :]
    beta = vec[2:3, :]
    b1 = vec[3:4, :]
    b2 = vec[4:5, :]

    # ---- fused QKV projection (single wide matmul, f32 accumulate) ----
    qkv = (
        jnp.dot(x2.astype(compute_dtype), wqkv_ref[...],
                preferred_element_type=jnp.float32, precision=prec)
        + bqkv_ref[...]
    )                                       # (TB*S, 3D) f32

    # Fold the 1/sqrt(D) attention scale into q (S*D elems instead of S*S scores).
    scale = 1.0 / math.sqrt(D)
    q = (qkv[:, :D] * scale).reshape(TB, S, D).astype(compute_dtype)
    k = qkv[:, D:2 * D].reshape(TB, S, D).astype(compute_dtype)
    v = qkv[:, 2 * D:].reshape(TB, S, D).astype(compute_dtype)

    if kv_tile is None:
        # ---- monolithic single-head causal attention (small / moderate S) ----
        s = jnp.einsum("bqd,bkd->bqk", q, k,
                       preferred_element_type=jnp.float32, precision=prec)
        rowi = lax.broadcasted_iota(jnp.int32, (S, S), 0)
        coli = lax.broadcasted_iota(jnp.int32, (S, S), 1)
        s = jnp.where((coli <= rowi)[None, :, :], s, NEG)
        s = s - jnp.max(s, axis=-1, keepdims=True)
        p = jnp.exp(s)
        p = p * recip(jnp.sum(p, axis=-1, keepdims=True))
        attn = jnp.einsum("bqk,bkd->bqd", p.astype(compute_dtype), v,
                          preferred_element_type=jnp.float32, precision=prec)
    else:
        # ---- flash-style online softmax over KV tiles (bounds VMEM temps) ----
        k_scr, v_scr = scratch
        k_scr[...] = k
        v_scr[...] = v
        n_tiles = S // kv_tile
        rowi = lax.broadcasted_iota(jnp.int32, (S, kv_tile), 0)
        coli = lax.broadcasted_iota(jnp.int32, (S, kv_tile), 1)

        def kv_step(t, carry):
            m, l, acc = carry
            start = pl.multiple_of(t * kv_tile, kv_tile)
            k_t = k_scr[:, pl.ds(start, kv_tile), :]     # (TB, tk, D)
            v_t = v_scr[:, pl.ds(start, kv_tile), :]
            s = jnp.einsum("bqd,bkd->bqk", q, k_t,
                           preferred_element_type=jnp.float32, precision=prec)
            allowed = (coli + t * kv_tile) <= rowi        # causal, per tile
            s = jnp.where(allowed[None, :, :], s, NEG)
            m_new = jnp.maximum(m, jnp.max(s, axis=-1, keepdims=True))
            alpha = jnp.exp(m - m_new)
            p = jnp.exp(s - m_new)
            l_new = alpha * l + jnp.sum(p, axis=-1, keepdims=True)
            acc_new = alpha * acc + jnp.einsum(
                "bqk,bkd->bqd", p.astype(compute_dtype), v_t,
                preferred_element_type=jnp.float32, precision=prec)
            return m_new, l_new, acc_new

        m0 = jnp.full((TB, S, 1), -1e30, jnp.float32)
        l0 = jnp.zeros((TB, S, 1), jnp.float32)
        acc0 = jnp.zeros((TB, S, D), jnp.float32)
        m, l, acc = lax.fori_loop(0, n_tiles, kv_step, (m0, l0, acc0))
        attn = acc * recip(l)

    attn2 = attn.reshape(TB * S, D)
    attn_out = (
        jnp.dot(attn2.astype(compute_dtype), wo_ref[...],
                preferred_element_type=jnp.float32, precision=prec)
        + bo
    )
    x1 = attn_out + x2                      # first residual, (TB*S, D) f32

    # ---- FeedForward: LayerNorm -> Linear -> GELU -> Linear -> GELU ----
    mu = jnp.mean(x1, axis=-1, keepdims=True)
    var = jnp.mean((x1 - mu) * (x1 - mu), axis=-1, keepdims=True)
    xn = (x1 - mu) * lax.rsqrt(var + LN_EPS)
    xn = xn * gamma + beta

    h = (
        jnp.dot(xn.astype(compute_dtype), w1_ref[...],
                preferred_element_type=jnp.float32, precision=prec)
        + b1
    )
    h = _gelu(h, approx_gelu)
    f = (
        jnp.dot(h.astype(compute_dtype), w2_ref[...],
                preferred_element_type=jnp.float32, precision=prec)
        + b2
    )
    f = _gelu(f, approx_gelu)

    out_ref[...] = (f + x1).reshape(TB, S, D)   # second residual


def _device_info():
    """Heuristic (num_tensorcores, vmem_limit_bytes) from the device kind."""
    try:
        kind = jax.devices()[0].device_kind.lower()
    except Exception:
        kind = ""
    two_tc = any(t in kind for t in ("v7", "v4", "v5p"))
    vmem_limit = (48 << 20) if "v7" in kind else (96 << 20)
    return (2 if two_tc else 1), vmem_limit


def _choose_block_b(B, S, num_tc, target_rows=512):
    """Batch-block size: fill ~target_rows MXU rows per grid step.

    Single-TC chips (v5e/v6e): the grid is a serial loop, so take the largest
    block. Only on multi-TC chips (v7x / megacore) force >= num_tc grid steps.
    """
    tb = max(1, min(B, max(1, target_rows // max(S, 1))))
    if num_tc > 1 and B >= num_tc:
        tb = min(tb, pl.cdiv(B, num_tc))
    return tb


def _choose_kv_tile(S, flash_threshold=512):
    if S <= flash_threshold:
        return None
    for t in (512, 256, 128):
        if S % t == 0:
            return t
    # TODO(synk): ragged last KV tile not handled; fall back to monolithic scores.
    return None


def decoder_block(x, params, *, block_b=None, kv_tile="auto",
                  approx_gelu=True, compute_dtype=jnp.bfloat16):
    """x: (B, S, DIM) float32. params: 14-tuple of pre-transposed (in,out) weights."""
    wq, wk, wv, wo, bq, bk, bv, bo, g, beta, w1, b1, w2, b2 = params
    B, S, D = x.shape
    assert D == DIM

    # Pack / pre-cast parameters (one-time wrapper-side work).
    wqkv = jnp.concatenate([wq, wk, wv], axis=1).astype(compute_dtype)          # (D, 3D)
    bqkv = jnp.concatenate([bq, bk, bv], axis=1).astype(jnp.float32)            # (1, 3D)
    vecs = jnp.concatenate([bo, g, beta, b1, b2], axis=0).astype(jnp.float32)   # (5, D)
    wo_c = wo.astype(compute_dtype)
    w1_c = w1.astype(compute_dtype)
    w2_c = w2.astype(compute_dtype)

    num_tc, vmem_limit = _device_info()
    if block_b is None:
        block_b = _choose_block_b(B, S, num_tc)
    block_b = max(1, min(block_b, B))
    nb = pl.cdiv(B, block_b)
    B_pad = nb * block_b
    if B_pad != B:
        # Whole blocks via batch padding (padded rows are independent and dropped).
        x = jnp.pad(x, ((0, B_pad - B), (0, 0), (0, 0)))

    if kv_tile == "auto":
        kv_tile = _choose_kv_tile(S)
    if kv_tile is not None and (kv_tile >= S or S % kv_tile != 0 or kv_tile % 128 != 0):
        kv_tile = None

    kernel = functools.partial(
        _decoder_block_kernel,
        kv_tile=kv_tile,
        approx_gelu=approx_gelu,
        compute_dtype=compute_dtype,
    )

    def _const_spec(shape):
        return pl.BlockSpec(shape, lambda b: (0, 0), **_CONST_PIPELINE_KW)

    x_spec = pl.BlockSpec((block_b, S, D), lambda b: (b, 0, 0))
    in_specs = [
        x_spec,
        _const_spec((D, 3 * D)),   # Wqkv
        _const_spec((D, D)),       # Wo
        _const_spec((D, D)),       # W1
        _const_spec((D, D)),       # W2
        _const_spec((1, 3 * D)),   # bqkv
        _const_spec((5, D)),       # [bo, gamma, beta, b1, b2]
    ]
    scratch_shapes = []
    if kv_tile is not None:
        scratch_shapes = [
            pltpu.VMEM((block_b, S, D), compute_dtype),   # K
            pltpu.VMEM((block_b, S, D), compute_dtype),   # V
        ]

    out = pl.pallas_call(
        kernel,
        out_shape=jax.ShapeDtypeStruct((B_pad, S, D), jnp.float32),
        grid_spec=pltpu.PrefetchScalarGridSpec(
            num_scalar_prefetch=0,
            grid=(nb,),
            in_specs=in_specs,
            out_specs=x_spec,
            scratch_shapes=scratch_shapes,
        ),
        compiler_params=pltpu.CompilerParams(
            dimension_semantics=("parallel",),
            vmem_limit_bytes=vmem_limit,
        ),
    )(x, wqkv, wo_c, w1_c, w2_c, bqkv, vecs)

    return out[:B] if B_pad != B else out


def decoder_block_reference(x, params):
    """Plain-JAX f32 reference (matches the PyTorch module's math)."""
    wq, wk, wv, wo, bq, bk, bv, bo, g, beta, w1, b1, w2, b2 = params
    B, S, D = x.shape
    q = x @ wq + bq
    k = x @ wk + bk
    v = x @ wv + bv
    scores = jnp.einsum("bqd,bkd->bqk", q, k) / math.sqrt(D)
    causal = jnp.arange(S)[None, :] <= jnp.arange(S)[:, None]
    scores = jnp.where(causal[None], scores, NEG)
    p = jax.nn.softmax(scores, axis=-1)
    attn = jnp.einsum("bqk,bkd->bqd", p, v)
    x1 = attn @ wo + bo + x
    mu = x1.mean(-1, keepdims=True)
    var = ((x1 - mu) ** 2).mean(-1, keepdims=True)
    xn = (x1 - mu) / jnp.sqrt(var + LN_EPS) * g + beta
    h = jax.nn.gelu(xn @ w1 + b1, approximate=False)
    f = jax.nn.gelu(h @ w2 + b2, approximate=False)
    return f + x1


if __name__ == "__main__":
    key = jax.random.PRNGKey(0)
    keys = jax.random.split(key, 16)

    def init(k, shape, scale=0.05):
        return (jax.random.normal(k, shape, jnp.float32) * scale).astype(jnp.float32)

    # Weights stored as (in, out) == PyTorch W.T so the kernel can do x @ W.
    wq = init(keys[0], (DIM, DIM))
    wk = init(keys[1], (DIM, DIM))
    wv = init(keys[2], (DIM, DIM))
    wo = init(keys[3], (DIM, DIM))
    bq = init(keys[4], (1, DIM))
    bk = init(keys[5], (1, DIM))
    bv = init(keys[6], (1, DIM))
    bo = init(keys[7], (1, DIM))
    ln_g = jnp.ones((1, DIM), jnp.float32) + init(keys[8], (1, DIM), 0.01)
    ln_b = init(keys[9], (1, DIM), 0.01)
    w1 = init(keys[10], (DIM, DIM))
    b1 = init(keys[11], (1, DIM))
    w2 = init(keys[12], (DIM, DIM))
    b2 = init(keys[13], (1, DIM))
    params = (wq, wk, wv, wo, bq, bk, bv, bo, ln_g, ln_b, w1, b1, w2, b2)

    # TODO(synk): key-padding-mask path of MHA_SelfAttention not implemented;
    # only the padding_mask=None causal path of DecoderBlock.forward is covered.

    # 1) Small-shape check: bf16 fast path, monolithic attention.
    B, S = 2, 8
    x = jax.random.normal(keys[14], (B, S, DIM), jnp.float32)
    out = jax.block_until_ready(decoder_block(x, params))
    ref = decoder_block_reference(x, params)
    assert out.shape == (B, S, DIM)
    assert jnp.allclose(out, ref, rtol=2e-2, atol=2e-2), float(jnp.max(jnp.abs(out - ref)))

    # 2) High-precision validation (f32 matmuls, exact GELU / reciprocal) with a
    #    tight tolerance, per the correctness-review recommendation.
    out_hp = jax.block_until_ready(
        decoder_block(x, params, approx_gelu=False, compute_dtype=jnp.float32))
    assert jnp.allclose(out_hp, ref, rtol=2e-3, atol=2e-3), float(jnp.max(jnp.abs(out_hp - ref)))

    # 3) Flash-style KV-tiled attention path (still small: S=256, tk=128).
    S2 = 256
    x2 = jax.random.normal(keys[15], (B, S2, DIM), jnp.float32)
    out2 = jax.block_until_ready(decoder_block(x2, params, kv_tile=128))
    ref2 = decoder_block_reference(x2, params)
    assert out2.shape == (B, S2, DIM)
    assert jnp.allclose(out2, ref2, rtol=2e-2, atol=2e-2), float(jnp.max(jnp.abs(out2 - ref2)))

    print("KERNEL_OK")
</pallas_src>

<mosaic_0001>
module attributes {stable_mosaic.version = 11 : i64} {
  func.func @_decoder_block_kernel(%arg0: i32, %arg1: memref<2x8x128xf32, #tpu.memory_space<vmem>>, %arg2: memref<128x384xbf16, #tpu.memory_space<vmem>>, %arg3: memref<128x128xbf16, #tpu.memory_space<vmem>>, %arg4: memref<128x128xbf16, #tpu.memory_space<vmem>>, %arg5: memref<128x128xbf16, #tpu.memory_space<vmem>>, %arg6: memref<1x384xf32, #tpu.memory_space<vmem>>, %arg7: memref<5x128xf32, #tpu.memory_space<vmem>>, %arg8: memref<2x8x128xf32, #tpu.memory_space<vmem>>) attributes {dimension_semantics = [#tpu.dimension_semantics<parallel>], iteration_bounds = array<i64: 1>, scalar_prefetch = 0 : i64, scratch_operands = 0 : i64, tpu.core_type = #tpu.core_type<tc>, window_params = [{transform_indices = @transform_0, window_bounds = array<i64: 2, 8, 128>}, {pipeline_mode = #tpu.pipeline_mode<synchronous>, transform_indices = @transform_1, window_bounds = array<i64: 128, 384>}, {pipeline_mode = #tpu.pipeline_mode<synchronous>, transform_indices = @transform_2, window_bounds = array<i64: 128, 128>}, {pipeline_mode = #tpu.pipeline_mode<synchronous>, transform_indices = @transform_3, window_bounds = array<i64: 128, 128>}, {pipeline_mode = #tpu.pipeline_mode<synchronous>, transform_indices = @transform_4, window_bounds = array<i64: 128, 128>}, {pipeline_mode = #tpu.pipeline_mode<synchronous>, transform_indices = @transform_5, window_bounds = array<i64: 1, 384>}, {pipeline_mode = #tpu.pipeline_mode<synchronous>, transform_indices = @transform_6, window_bounds = array<i64: 5, 128>}, {transform_indices = @transform_7, window_bounds = array<i64: 2, 8, 128>}]} {
    %c0 = arith.constant 0 : index
    %c0_0 = arith.constant 0 : index
    %c0_1 = arith.constant 0 : index
    %0 = vector.load %arg1[%c0, %c0_0, %c0_1] : memref<2x8x128xf32, #tpu.memory_space<vmem>>, vector<2x8x128xf32>
    %1 = vector.shape_cast %0 : vector<2x8x128xf32> to vector<16x128xf32>
    %c0_2 = arith.constant 0 : index
    %c0_3 = arith.constant 0 : index
    %2 = vector.load %arg7[%c0_2, %c0_3] : memref<5x128xf32, #tpu.memory_space<vmem>>, vector<5x128xf32>
    %3 = vector.extract_strided_slice %2 {offsets = [0, 0], sizes = [1, 128], strides = [1, 1]} : vector<5x128xf32> to vector<1x128xf32>
    %4 = vector.extract_strided_slice %2 {offsets = [1, 0], sizes = [1, 128], strides = [1, 1]} : vector<5x128xf32> to vector<1x128xf32>
    %5 = vector.extract_strided_slice %2 {offsets = [2, 0], sizes = [1, 128], strides = [1, 1]} : vector<5x128xf32> to vector<1x128xf32>
    %6 = vector.extract_strided_slice %2 {offsets = [3, 0], sizes = [1, 128], strides = [1, 1]} : vector<5x128xf32> to vector<1x128xf32>
    %7 = vector.extract_strided_slice %2 {offsets = [4, 0], sizes = [1, 128], strides = [1, 1]} : vector<5x128xf32> to vector<1x128xf32>
    %8 = arith.truncf %1 : vector<16x128xf32> to vector<16x128xbf16>
    %c0_4 = arith.constant 0 : index
    %c0_5 = arith.constant 0 : index
    %9 = vector.load %arg2[%c0_4, %c0_5] : memref<128x384xbf16, #tpu.memory_space<vmem>>, vector<128x384xbf16>
    %cst = arith.constant dense<0.000000e+00> : vector<16x384xf32>
    %10 = tpu.matmul %8, %9, %cst {dimension_numbers = #tpu.dot_dimension_numbers<[1], [0], [0], [1], [0, 0, 1, 1], [], []>} : vector<16x128xbf16>, vector<128x384xbf16>, vector<16x384xf32> -> vector<16x384xf32>
    %c0_6 = arith.constant 0 : index
    %c0_7 = arith.constant 0 : index
    %11 = vector.load %arg6[%c0_6, %c0_7] : memref<1x384xf32, #tpu.memory_space<vmem>>, vector<1x384xf32>
    %12 = vector.broadcast %11 : vector<1x384xf32> to vector<16x384xf32>
    %13 = arith.addf %10, %12 : vector<16x384xf32>
    %14 = vector.extract_strided_slice %13 {offsets = [0, 0], sizes = [16, 128], strides = [1, 1]} : vector<16x384xf32> to vector<16x128xf32>
    %cst_8 = arith.constant 0.0883883461 : f32
    %15 = vector.broadcast %cst_8 : f32 to vector<16x128xf32>
    %16 = arith.mulf %14, %15 : vector<16x128xf32>
    %17 = vector.shape_cast %16 : vector<16x128xf32> to vector<2x8x128xf32>
    %18 = arith.truncf %17 : vector<2x8x128xf32> to vector<2x8x128xbf16>
    %19 = vector.extract_strided_slice %13 {offsets = [0, 128], sizes = [16, 128], strides = [1, 1]} : vector<16x384xf32> to vector<16x128xf32>
    %20 = vector.shape_cast %19 : vector<16x128xf32> to vector<2x8x128xf32>
    %21 = arith.truncf %20 : vector<2x8x128xf32> to vector<2x8x128xbf16>
    %22 = vector.extract_strided_slice %13 {offsets = [0, 256], sizes = [16, 128], strides = [1, 1]} : vector<16x384xf32> to vector<16x128xf32>
    %23 = vector.shape_cast %22 : vector<16x128xf32> to vector<2x8x128xf32>
    %24 = arith.truncf %23 : vector<2x8x128xf32> to vector<2x8x128xbf16>
    "tpu.trace_start"() <{level = 10 : i32, message = "bqd,bkd->bqk"}> : () -> ()
    %cst_9 = arith.constant dense<0.000000e+00> : vector<2x8x8xf32>
    %25 = tpu.matmul %18, %21, %cst_9 {dimension_numbers = #tpu.dot_dimension_numbers<[2], [2], [1], [1], [0, 0, 0, 1, 1, 1], [0], [0]>} : vector<2x8x128xbf16>, vector<2x8x128xbf16>, vector<2x8x8xf32> -> vector<2x8x8xf32>
    "tpu.trace_stop"() : () -> ()
    %26 = tpu.iota {dimensions = array<i32: 0>} : vector<8x8xi32>
    %27 = tpu.iota {dimensions = array<i32: 1>} : vector<8x8xi32>
    %28 = arith.cmpi sle, %27, %26 : vector<8x8xi32>
    %29 = vector.shape_cast %28 : vector<8x8xi1> to vector<1x8x8xi1>
    %cst_10 = arith.constant -1.000000e+09 : f32
    %30 = vector.shape_cast %29 : vector<1x8x8xi1> to vector<1x8x8xi1>
    %31 = vector.broadcast %30 : vector<1x8x8xi1> to vector<2x8x8xi1>
    %32 = vector.broadcast %cst_10 : f32 to vector<2x8x8xf32>
    %33 = arith.select %31, %25, %32 : vector<2x8x8xi1>, vector<2x8x8xf32>
    %cst_11 = arith.constant dense<0xFF800000> : vector<2x8xf32>
    %34 = vector.multi_reduction <maximumf>, %33, %cst_11 [2] : vector<2x8x8xf32> to vector<2x8xf32>
    %35 = vector.shape_cast %34 : vector<2x8xf32> to vector<2x8x1xf32>
    %36 = vector.broadcast %35 : vector<2x8x1xf32> to vector<2x8x8xf32>
    %37 = arith.subf %33, %36 : vector<2x8x8xf32>
    %38 = math.exp %37 : vector<2x8x8xf32>
    %cst_12 = arith.constant dense<0.000000e+00> : vector<2x8xf32>
    %39 = vector.multi_reduction <add>, %38, %cst_12 [2] : vector<2x8x8xf32> to vector<2x8xf32>
    %40 = vector.shape_cast %39 : vector<2x8xf32> to vector<2x8x1xf32>
    %41 = tpu.reciprocal %40 {approx = true} : vector<2x8x1xf32> -> vector<2x8x1xf32>
    %42 = vector.broadcast %41 : vector<2x8x1xf32> to vector<2x8x8xf32>
    %43 = arith.mulf %38, %42 : vector<2x8x8xf32>
    %44 = arith.truncf %43 : vector<2x8x8xf32> to vector<2x8x8xbf16>
    "tpu.trace_start"() <{level = 10 : i32, message = "bqk,bkd->bqd"}> : () -> ()
    %cst_13 = arith.constant dense<0.000000e+00> : vector<2x8x128xf32>
    %45 = tpu.matmul %44, %24, %cst_13 {dimension_numbers = #tpu.dot_dimension_numbers<[2], [1], [1], [2], [0, 0, 0, 1, 1, 2], [0], [0]>} : vector<2x8x8xbf16>, vector<2x8x128xbf16>, vector<2x8x128xf32> -> vector<2x8x128xf32>
    "tpu.trace_stop"() : () -> ()
    %46 = vector.shape_cast %45 : vector<2x8x128xf32> to vector<16x128xf32>
    %47 = arith.truncf %46 : vector<16x128xf32> to vector<16x128xbf16>
    %c0_14 = arith.constant 0 : index
    %c0_15 = arith.constant 0 : index
    %48 = vector.load %arg3[%c0_14, %c0_15] : memref<128x128xbf16, #tpu.memory_space<vmem>>, vector<128x128xbf16>
    %cst_16 = arith.constant dense<0.000000e+00> : vector<16x128xf32>
    %49 = tpu.matmul %47, %48, %cst_16 {dimension_numbers = #tpu.dot_dimension_numbers<[1], [0], [0], [1], [0, 0, 1, 1], [], []>} : vector<16x128xbf16>, vector<128x128xbf16>, vector<16x128xf32> -> vector<16x128xf32>
    %50 = vector.broadcast %3 : vector<1x128xf32> to vector<16x128xf32>
    %51 = arith.addf %49, %50 : vector<16x128xf32>
    %52 = arith.addf %51, %1 : vector<16x128xf32>
    %cst_17 = arith.constant dense<0.000000e+00> : vector<16xf32>
    %53 = vector.multi_reduction <add>, %52, %cst_17 [1] : vector<16x128xf32> to vector<16xf32>
    %54 = vector.shape_cast %53 : vector<16xf32> to vector<16x1xf32>
    %cst_18 = arith.constant 1.280000e+02 : f32
    %55 = vector.broadcast %cst_18 : f32 to vector<16x1xf32>
    %56 = arith.divf %54, %55 : vector<16x1xf32>
    %57 = vector.broadcast %56 : vector<16x1xf32> to vector<16x128xf32>
    %58 = arith.subf %52, %57 : vector<16x128xf32>
    %59 = vector.broadcast %56 : vector<16x1xf32> to vector<16x128xf32>
    %60 = arith.subf %52, %59 : vector<16x128xf32>
    %61 = arith.mulf %58, %60 : vector<16x128xf32>
    %cst_19 = arith.constant dense<0.000000e+00> : vector<16xf32>
    %62 = vector.multi_reduction <add>, %61, %cst_19 [1] : vector<16x128xf32> to vector<16xf32>
    %63 = vector.shape_cast %62 : vector<16xf32> to vector<16x1xf32>
    %cst_20 = arith.constant 1.280000e+02 : f32
    %64 = vector.broadcast %cst_20 : f32 to vector<16x1xf32>
    %65 = arith.divf %63, %64 : vector<16x1xf32>
    %66 = vector.broadcast %56 : vector<16x1xf32> to vector<16x128xf32>
    %67 = arith.subf %52, %66 : vector<16x128xf32>
    %cst_21 = arith.constant 9.99999974E-6 : f32
    %68 = vector.broadcast %cst_21 : f32 to vector<16x1xf32>
    %69 = arith.addf %65, %68 : vector<16x1xf32>
    %70 = math.rsqrt %69 : vector<16x1xf32>
    %71 = vector.broadcast %70 : vector<16x1xf32> to vector<16x128xf32>
    %72 = arith.mulf %67, %71 : vector<16x128xf32>
    %73 = vector.broadcast %4 : vector<1x128xf32> to vector<16x128xf32>
    %74 = arith.mulf %72, %73 : vector<16x128xf32>
    %75 = vector.broadcast %5 : vector<1x128xf32> to vector<16x128xf32>
    %76 = arith.addf %74, %75 : vector<16x128xf32>
    %77 = arith.truncf %76 : vector<16x128xf32> to vector<16x128xbf16>
    %c0_22 = arith.constant 0 : index
    %c0_23 = arith.constant 0 : index
    %78 = vector.load %arg4[%c0_22, %c0_23] : memref<128x128xbf16, #tpu.memory_space<vmem>>, vector<128x128xbf16>
    %cst_24 = arith.constant dense<0.000000e+00> : vector<16x128xf32>
    %79 = tpu.matmul %77, %78, %cst_24 {dimension_numbers = #tpu.dot_dimension_numbers<[1], [0], [0], [1], [0, 0, 1, 1], [], []>} : vector<16x128xbf16>, vector<128x128xbf16>, vector<16x128xf32> -> vector<16x128xf32>
    %80 = vector.broadcast %6 : vector<1x128xf32> to vector<16x128xf32>
    %81 = arith.addf %79, %80 : vector<16x128xf32>
    %cst_25 = arith.constant 5.000000e-01 : f32
    %82 = vector.broadcast %cst_25 : f32 to vector<16x128xf32>
    %83 = arith.mulf %82, %81 : vector<16x128xf32>
    %cst_26 = arith.constant 4.471500e-02 : f32
    %84 = vector.broadcast %cst_26 : f32 to vector<16x128xf32>
    %85 = arith.mulf %84, %81 : vector<16x128xf32>
    %86 = arith.mulf %85, %81 : vector<16x128xf32>
    %87 = arith.mulf %86, %81 : vector<16x128xf32>
    %88 = arith.addf %81, %87 : vector<16x128xf32>
    %cst_27 = arith.constant 0.797884583 : f32
    %89 = vector.broadcast %cst_27 : f32 to vector<16x128xf32>
    %90 = arith.mulf %89, %88 : vector<16x128xf32>
    %91 = math.tanh %90 : vector<16x128xf32>
    %cst_28 = arith.constant 1.000000e+00 : f32
    %92 = vector.broadcast %cst_28 : f32 to vector<16x128xf32>
    %93 = arith.addf %92, %91 : vector<16x128xf32>
    %94 = arith.mulf %83, %93 : vector<16x128xf32>
    %95 = arith.truncf %94 : vector<16x128xf32> to vector<16x128xbf16>
    %c0_29 = arith.constant 0 : index
    %c0_30 = arith.constant 0 : index
    %96 = vector.load %arg5[%c0_29, %c0_30] : memref<128x128xbf16, #tpu.memory_space<vmem>>, vector<128x128xbf16>
    %cst_31 = arith.constant dense<0.000000e+00> : vector<16x128xf32>
    %97 = tpu.matmul %95, %96, %cst_31 {dimension_numbers = #tpu.dot_dimension_numbers<[1], [0], [0], [1], [0, 0, 1, 1], [], []>} : vector<16x128xbf16>, vector<128x128xbf16>, vector<16x128xf32> -> vector<16x128xf32>
    %98 = vector.broadcast %7 : vector<1x128xf32> to vector<16x128xf32>
    %99 = arith.addf %97, %98 : vector<16x128xf32>
    %cst_32 = arith.constant 5.000000e-01 : f32
    %100 = vector.broadcast %cst_32 : f32 to vector<16x128xf32>
    %101 = arith.mulf %100, %99 : vector<16x128xf32>
    %cst_33 = arith.constant 4.471500e-02 : f32
    %102 = vector.broadcast %cst_33 : f32 to vector<16x128xf32>
    %103 = arith.mulf %102, %99 : vector<16x128xf32>
    %104 = arith.mulf %103, %99 : vector<16x128xf32>
    %105 = arith.mulf %104, %99 : vector<16x128xf32>
    %106 = arith.addf %99, %105 : vector<16x128xf32>
    %cst_34 = arith.constant 0.797884583 : f32
    %107 = vector.broadcast %cst_34 : f32 to vector<16x128xf32>
    %108 = arith.mulf %107, %106 : vector<16x128xf32>
    %109 = math.tanh %108 : vector<16x128xf32>
    %cst_35 = arith.constant 1.000000e+00 : f32
    %110 = vector.broadcast %cst_35 : f32 to vector<16x128xf32>
    %111 = arith.addf %110, %109 : vector<16x128xf32>
    %112 = arith.mulf %101, %111 : vector<16x128xf32>
    %113 = arith.addf %112, %52 : vector<16x128xf32>
    %114 = vector.shape_cast %113 : vector<16x128xf32> to vector<2x8x128xf32>
    %c0_36 = arith.constant 0 : index
    %c0_37 = arith.constant 0 : index
    %c0_38 = arith.constant 0 : index
    %115 = vector.load %arg8[%c0_36, %c0_37, %c0_38] : memref<2x8x128xf32, #tpu.memory_space<vmem>>, vector<2x8x128xf32>
    tpu.vector_store %arg8[%c0_36, %c0_37, %c0_38], %114 {strides = array<i32>} : memref<2x8x128xf32, #tpu.memory_space<vmem>>, vector<2x8x128xf32>,
    return
  }
  func.func @transform_0(%arg0: i32) -> (i32, i32, i32) {
    %c0_i32 = arith.constant 0 : i32
    %c0_i32_0 = arith.constant 0 : i32
    %c0_i32_1 = arith.constant 0 : i32
    return %arg0, %c0_i32, %c0_i32_0 : i32, i32, i32
  }
  func.func @transform_1(%arg0: i32) -> (i32, i32) {
    %c0_i32 = arith.constant 0 : i32
    %c0_i32_0 = arith.constant 0 : i32
    %c0_i32_1 = arith.constant 0 : i32
    return %c0_i32, %c0_i32_0 : i32, i32
  }
  func.func @transform_2(%arg0: i32) -> (i32, i32) {
    %c0_i32 = arith.constant 0 : i32
    %c0_i32_0 = arith.constant 0 : i32
    %c0_i32_1 = arith.constant 0 : i32
    return %c0_i32, %c0_i32_0 : i32, i32
  }
  func.func @transform_3(%arg0: i32) -> (i32, i32) {
    %c0_i32 = arith.constant 0 : i32
    %c0_i32_0 = arith.constant 0 : i32
    %c0_i32_1 = arith.constant 0 : i32
    return %c0_i32, %c0_i32_0 : i32, i32
  }
  func.func @transform_4(%arg0: i32) -> (i32, i32) {
    %c0_i32 = arith.constant 0 : i32
    %c0_i32_0 = arith.constant 0 : i32
    %c0_i32_1 = arith.constant 0 : i32
    return %c0_i32, %c0_i32_0 : i32, i32
  }
  func.func @transform_5(%arg0: i32) -> (i32, i32) {
    %c0_i32 = arith.constant 0 : i32
    %c0_i32_0 = arith.constant 0 : i32
    %c0_i32_1 = arith.constant 0 : i32
    return %c0_i32, %c0_i32_0 : i32, i32
  }
  func.func @transform_6(%arg0: i32) -> (i32, i32) {
    %c0_i32 = arith.constant 0 : i32
    %c0_i32_0 = arith.constant 0 : i32
    %c0_i32_1 = arith.constant 0 : i32
    return %c0_i32, %c0_i32_0 : i32, i32
  }
  func.func @transform_7(%arg0: i32) -> (i32, i32, i32) {
    %c0_i32 = arith.constant 0 : i32
    %c0_i32_0 = arith.constant 0 : i32
    %c0_i32_1 = arith.constant 0 : i32
    return %arg0, %c0_i32, %c0_i32_0 : i32, i32, i32
  }
}

</mosaic_0001>

<llo_original>
// kernel: tpu_custom_call.1
$region0: #{tpu_custom_call.1}
  #allocation0 [shape = 'u32[]', space=smem, size = 0x4, offset = 0x4, fixed_abs, tag = 'smem constant byte address 0x4 - core index']
  #allocation1 [shape = 'u32[72,128]{1,0:T(1,128)}', space=vmem, size = 0x9000, scoped, tag = 'internal scratch']
  %s0 = inlined_call_operand.hbm [shape: f32[2,8,128], index: 0, kind: input, shape index: {}]
  %s1 = inlined_call_operand.hbm [shape: bf16[128,384], index: 1, kind: input, shape index: {}]
  %s2 = inlined_call_operand.hbm [shape: bf16[128,128], index: 2, kind: input, shape index: {}]
  %s3 = inlined_call_operand.hbm [shape: bf16[128,128], index: 3, kind: input, shape index: {}]
  %s4 = inlined_call_operand.hbm [shape: bf16[128,128], index: 4, kind: input, shape index: {}]
  %s5 = inlined_call_operand.vmem [shape: f32[1,384], index: 5, kind: input, shape index: {}]
  %s6 = inlined_call_operand.hbm [shape: f32[5,128], index: 6, kind: input, shape index: {}]
  %s7 = inlined_call_operand.hbm [shape: f32[2,8,128], index: 7, kind: output, shape index: {}]
  %s8 = sld [smem:[#allocation0]]
  $region62: #{tpu_custom_call.1} parent=0
    _
  %s10 = ssub.s32 1, %s8
  %s11 = scalar_select 0, %s10, %s8
  $region1: #{tpu_custom_call.1} parent=0
    #allocation2 [shape = 'u8[8192]{0}', space=vmem, size = 0x2000, scoped, tag = 'input window, operand 0, single buffered']
    #allocation3 [shape = 's32[1]{0}', space=sflag, size = 0x4, scoped, tag = 'scoped memory for tpu_custom_call.1']
    #allocation4 [shape = 's32[1]{0}', space=sflag, size = 0x4, scoped, tag = 'scoped memory for tpu_custom_call.1']
    #allocation5 [shape = 'u8[98304]{0}', space=vmem, size = 0x18000, scoped, tag = 'input window, operand 1, single buffered']
    #allocation6 [shape = 's32[1]{0}', space=sflag, size = 0x4, scoped, tag = 'scoped memory for tpu_custom_call.1']
    #allocation7 [shape = 'u8[32768]{0}', space=vmem, size = 0x8000, scoped, tag = 'input window, operand 2, single buffered']
    #allocation8 [shape = 'u8[32768]{0}', space=vmem, size = 0x8000, scoped, tag = 'input window, operand 3, single buffered']
    #allocation9 [shape = 's32[1]{0}', space=sflag, size = 0x4, scoped, tag = 'scoped memory for tpu_custom_call.1']
    #allocation10 [shape = 'u8[32768]{0}', space=vmem, size = 0x8000, scoped, tag = 'input window, operand 4, single buffered']
    #allocation11 [shape = 'u8[4096]{0}', space=vmem, size = 0x1000, scoped, tag = 'input window, operand 6, single buffered']
    #allocation12 [shape = 's32[1]{0}', space=sflag, size = 0x4, scoped, tag = 'scoped memory for tpu_custom_call.1']
    #allocation13 [shape = 'u8[8192]{0}', space=vmem, size = 0x2000, scoped, tag = 'output window, operand 0, single buffered']
    %12 = vsyncpa [#allocation3], 0
    %13 = vsyncpa [#allocation6], 0
    %14 = vsyncpa [#allocation9], 0
    %15 = vsyncpa [#allocation12], 0
    %16 = vsyncpa [#allocation4], 0
    // Predicated region
    $region2: #{tpu_custom_call.1} parent=1 // pred_check
      _
    $region3: #{tpu_custom_call.1} parent=1 // pred_check_branch
      %18 = sbr.rel (0) target = $region5
    $region4: #{tpu_custom_call.1} parent=1 // pred_region
      %20 = vsyncadd [#allocation3], 0
      %s21 = sshll.u32 %s0, 4
      %s22 = int_to_ptr.hbm [resolvable:$true] %s21
      %s23 = sshll.u32 [#allocation2], 4
      %s24 = int_to_ptr.vmem [resolvable:$true] %s23
      %29 = dma.hbm_to_vmem [thread:$0]  %s22, 256, %s24, [#allocation3], 128, 128, 8
    $region5: #{tpu_custom_call.1} parent=1 // pred_fallthru
      _
    // Predicated region
    $region6: #{tpu_custom_call.1} parent=1 // pred_check
      _
    $region7: #{tpu_custom_call.1} parent=1 // pred_check_branch
      %31 = sbr.rel (0) target = $region9
    $region8: #{tpu_custom_call.1} parent=1 // pred_region
      %33 = vsyncadd [#allocation6], 0
      %s34 = sshll.u32 %s1, 4
      %s35 = int_to_ptr.hbm [resolvable:$true] %s34
      %s36 = sshll.u32 [#allocation5], 4
      %s37 = int_to_ptr.vmem [resolvable:$true] %s36
      %42 = dma.hbm_to_vmem [thread:$0]  %s35, 3072, %s37, [#allocation6], 192, 192, 12
    $region9: #{tpu_custom_call.1} parent=1 // pred_fallthru
      _
    // Predicated region
    $region10: #{tpu_custom_call.1} parent=1 // pred_check
      _
    $region11: #{tpu_custom_call.1} parent=1 // pred_check_branch
      %44 = sbr.rel (0) target = $region13
    $region12: #{tpu_custom_call.1} parent=1 // pred_region
      %46 = vsyncadd [#allocation6], 0
      %s47 = sshll.u32 %s2, 4
      %s48 = int_to_ptr.hbm [resolvable:$true] %s47
      %s49 = sshll.u32 [#allocation7], 4
      %s50 = int_to_ptr.vmem [resolvable:$true] %s49
      %55 = dma.hbm_to_vmem [thread:$0]  %s48, 1024, %s50, [#allocation6], 64, 64, 4
    $region13: #{tpu_custom_call.1} parent=1 // pred_fallthru
      _
    // Predicated region
    $region14: #{tpu_custom_call.1} parent=1 // pred_check
      _
    $region15: #{tpu_custom_call.1} parent=1 // pred_check_branch
      %57 = sbr.rel (0) target = $region17
    $region16: #{tpu_custom_call.1} parent=1 // pred_region
      %59 = vsyncadd [#allocation9], 0
      %s60 = sshll.u32 %s3, 4
      %s61 = int_to_ptr.hbm [resolvable:$true] %s60
      %s62 = sshll.u32 [#allocation8], 4
      %s63 = int_to_ptr.vmem [resolvable:$true] %s62
      %68 = dma.hbm_to_vmem [thread:$0]  %s61, 1024, %s63, [#allocation9], 64, 64, 4
    $region17: #{tpu_custom_call.1} parent=1 // pred_fallthru
      _
    // Predicated region
    $region18: #{tpu_custom_call.1} parent=1 // pred_check
      _
    $region19: #{tpu_custom_call.1} parent=1 // pred_check_branch
      %70 = sbr.rel (0) target = $region21
    $region20: #{tpu_custom_call.1} parent=1 // pred_region
      %72 = vsyncadd [#allocation9], 0
      %s73 = sshll.u32 %s4, 4
      %s74 = int_to_ptr.hbm [resolvable:$true] %s73
      %s75 = sshll.u32 [#allocation10], 4
      %s76 = int_to_ptr.vmem [resolvable:$true] %s75
      %81 = dma.hbm_to_vmem [thread:$0]  %s74, 1024, %s76, [#allocation9], 64, 64, 4
    $region21: #{tpu_custom_call.1} parent=1 // pred_fallthru
      _
    // Predicated region
    $region22: #{tpu_custom_call.1} parent=1 // pred_check
      _
    $region23: #{tpu_custom_call.1} parent=1 // pred_check_branch
      %83 = sbr.rel (0) target = $region25
    $region24: #{tpu_custom_call.1} parent=1 // pred_region
      _
    $region25: #{tpu_custom_call.1} parent=1 // pred_fallthru
      _
    // Predicated region
    $region26: #{tpu_custom_call.1} parent=1 // pred_check
      _
    $region27: #{tpu_custom_call.1} parent=1 // pred_check_branch
      %85 = sbr.rel (0) target = $region29
    $region28: #{tpu_custom_call.1} parent=1 // pred_region
      %87 = vsyncadd [#allocation12], 0
      %s89 = sshll.u32 %s6, 4
      %s90 = int_to_ptr.hbm [resolvable:$true] %s89
      %s91 = sshll.u32 [#allocation11], 4
      %s92 = int_to_ptr.vmem [resolvable:$true] %s91
      %94 = dma.hbm_to_vmem [thread:$0]  %s90, 128, %s92, [#allocation12]
    $region29: #{tpu_custom_call.1} parent=1 // pred_fallthru
      _
    // Predicated region
    $region30: #{tpu_custom_call.1} parent=1 // pred_check
      _
    $region31: #{tpu_custom_call.1} parent=1 // pred_check_branch
      %96 = sbr.rel (0) target = $region33
    $region32: #{tpu_custom_call.1} parent=1 // pred_region
      %98 = dma.done [#allocation3], 256
    $region33: #{tpu_custom_call.1} parent=1 // pred_fallthru
      _
    // Predicated region
    $region34: #{tpu_custom_call.1} parent=1 // pred_check
      _
    $region35: #{tpu_custom_call.1} parent=1 // pred_check_branch
      %100 = sbr.rel (0) target = $region37
    $region36: #{tpu_custom_call.1} parent=1 // pred_region
      %102 = dma.done [#allocation6], 3072
    $region37: #{tpu_custom_call.1} parent=1 // pred_fallthru
      _
    // Predicated region
    $region38: #{tpu_custom_call.1} parent=1 // pred_check
      _
    $region39: #{tpu_custom_call.1} parent=1 // pred_check_branch
      %104 = sbr.rel (0) target = $region41
    $region40: #{tpu_custom_call.1} parent=1 // pred_region
      %106 = dma.done [#allocation6], 1024
    $region41: #{tpu_custom_call.1} parent=1 // pred_fallthru
      _
    // Predicated region
    $region42: #{tpu_custom_call.1} parent=1 // pred_check
      _
    $region43: #{tpu_custom_call.1} parent=1 // pred_check_branch
      %108 = sbr.rel (0) target = $region45
    $region44: #{tpu_custom_call.1} parent=1 // pred_region
      %110 = dma.done [#allocation9], 1024
    $region45: #{tpu_custom_call.1} parent=1 // pred_fallthru
      _
    // Predicated region
    $region46: #{tpu_custom_call.1} parent=1 // pred_check
      _
    $region47: #{tpu_custom_call.1} parent=1 // pred_check_branch
      %112 = sbr.rel (0) target = $region49
    $region48: #{tpu_custom_call.1} parent=1 // pred_region
      %114 = dma.done [#allocation9], 1024
    $region49: #{tpu_custom_call.1} parent=1 // pred_fallthru
      _
    // Predicated region
    $region50: #{tpu_custom_call.1} parent=1 // pred_check
      _
    $region51: #{tpu_custom_call.1} parent=1 // pred_check_branch
      %116 = sbr.rel (0) target = $region53
    $region52: #{tpu_custom_call.1} parent=1 // pred_region
      %118 = dma.done [#allocation12], 128
    $region53: #{tpu_custom_call.1} parent=1 // pred_fallthru
      _
    %v120 = vld [vmem:[#allocation2] sm:$0xff]
    %v121 = vld [vmem:[#allocation2 + $0x8] sm:$0xff]
    %v122 = vld [vmem:[#allocation11] sm:$0x1f]
    %v123 = vpack.c.bf16 %v121, %v120
    %v124 = vld [vmem:[#allocation5] sm:$0xff]
    %v125 = vld [vmem:[#allocation5 + $0x8] sm:$0xf]
    %v126 = vld [vmem:[#allocation5 + $0xc] sm:$0xff]
    %v127 = vld [vmem:[#allocation5 + $0x14] sm:$0xf]
    %v128 = vld [vmem:[#allocation5 + $0x18] sm:$0xff]
    %v129 = vld [vmem:[#allocation5 + $0x20] sm:$0xf]
    %v130 = vld [vmem:[#allocation5 + $0x24] sm:$0xff]
    %v131 = vld [vmem:[#allocation5 + $0x2c] sm:$0xf]
    %v132 = vld [vmem:[#allocation5 + $0x30] sm:$0xff]
    %v133 = vld [vmem:[#allocation5 + $0x38] sm:$0xf]
    %v134 = vld [vmem:[#allocation5 + $0x3c] sm:$0xff]
    %v135 = vld [vmem:[#allocation5 + $0x44] sm:$0xf]
    %v136 = vld [vmem:[#allocation5 + $0x48] sm:$0xff]
    %v137 = vld [vmem:[#allocation5 + $0x50] sm:$0xf]
    %v138 = vld [vmem:[#allocation5 + $0x54] sm:$0xff]
    %v139 = vld [vmem:[#allocation5 + $0x5c] sm:$0xf]
    %v140 = vld [vmem:[#allocation5 + $0x60] sm:$0xff]
    %v141 = vld [vmem:[#allocation5 + $0x68] sm:$0xf]
    %v142 = vld [vmem:[#allocation5 + $0x6c] sm:$0xff]
    %v143 = vld [vmem:[#allocation5 + $0x74] sm:$0xf]
    %v144 = vld [vmem:[#allocation5 + $0x78] sm:$0xff]
    %v145 = vld [vmem:[#allocation5 + $0x80] sm:$0xf]
    %v146 = vld [vmem:[#allocation5 + $0x84] sm:$0xff]
    %v147 = vld [vmem:[#allocation5 + $0x8c] sm:$0xf]
    %v148 = vld [vmem:[#allocation5 + $0x90] sm:$0xff]
    %v149 = vld [vmem:[#allocation5 + $0x98] sm:$0xf]
    %v150 = vld [vmem:[#allocation5 + $0x9c] sm:$0xff]
    %v151 = vld [vmem:[#allocation5 + $0xa4] sm:$0xf]
    %v152 = vld [vmem:[#allocation5 + $0xa8] sm:$0xff]
    %v153 = vld [vmem:[#allocation5 + $0xb0] sm:$0xf]
    %v154 = vld [vmem:[#allocation5 + $0xb4] sm:$0xff]
    %v155 = vld [vmem:[#allocation5 + $0xbc] sm:$0xf]
    %v156 = vld [vmem:[%s5] sm:$0x7]
    %v158 = vperm.slane %v156, 0
    %v159 = vperm.slane %v156, 1
    %v160 = vperm.slane %v156, 2
    %v196 = vunpack.c.l.b16 %v124
    %v197 = vunpack.c.h.b16 %v124
    %v198 = vunpack.c.l.b16 %v125
    %v199 = vunpack.c.l.b16 %v126
    %v200 = vunpack.c.h.b16 %v126
    %v201 = vunpack.c.l.b16 %v127
    %v202 = vunpack.c.l.b16 %v128
    %v203 = vunpack.c.h.b16 %v128
    %v204 = vunpack.c.l.b16 %v129
    %v205 = vunpack.c.l.b16 %v130
    %v206 = vunpack.c.h.b16 %v130
    %v207 = vunpack.c.l.b16 %v131
    %v208 = vunpack.c.l.b16 %v132
    %v209 = vunpack.c.h.b16 %v132
    %v210 = vunpack.c.l.b16 %v133
    %v211 = vunpack.c.l.b16 %v134
    %v212 = vunpack.c.h.b16 %v134
    %v213 = vunpack.c.l.b16 %v135
    %v214 = vunpack.c.l.b16 %v136
    %v215 = vunpack.c.h.b16 %v136
    %v216 = vunpack.c.l.b16 %v137
    %v217 = vunpack.c.l.b16 %v138
    %v218 = vunpack.c.h.b16 %v138
    %v219 = vunpack.c.l.b16 %v139
    %v220 = vunpack.c.l.b16 %v140
    %v221 = vunpack.c.h.b16 %v140
    %v222 = vunpack.c.l.b16 %v141
    %v223 = vunpack.c.l.b16 %v142
    %v224 = vunpack.c.h.b16 %v142
    %v225 = vunpack.c.l.b16 %v143
    %v226 = vunpack.c.l.b16 %v144
    %v227 = vunpack.c.h.b16 %v144
    %v228 = vunpack.c.l.b16 %v145
    %v229 = vunpack.c.l.b16 %v146
    %v230 = vunpack.c.h.b16 %v146
    %v231 = vunpack.c.l.b16 %v147
    %v232 = vunpack.c.l.b16 %v148
    %v233 = vunpack.c.h.b16 %v148
    %v234 = vunpack.c.l.b16 %v149
    %v235 = vunpack.c.l.b16 %v150
    %v236 = vunpack.c.h.b16 %v150
    %v237 = vunpack.c.l.b16 %v151
    %v238 = vunpack.c.l.b16 %v152
    %v239 = vunpack.c.h.b16 %v152
    %v240 = vunpack.c.l.b16 %v153
    %v241 = vunpack.c.l.b16 %v154
    %v242 = vunpack.c.h.b16 %v154
    %v243 = vunpack.c.l.b16 %v155
    %v244 = vpack.c.b16 %v199, %v196
    %v245 = vpack.c.b16 %v200, %v197
    %v246 = vpack.c.b16 %v201, %v198
    %v247 = vpack.c.b16 %v205, %v202
    %v248 = vpack.c.b16 %v206, %v203
    %v249 = vpack.c.b16 %v207, %v204
    %v250 = vpack.c.b16 %v211, %v208
    %v251 = vpack.c.b16 %v212, %v209
    %v252 = vpack.c.b16 %v213, %v210
    %v253 = vpack.c.b16 %v217, %v214
    %v254 = vpack.c.b16 %v218, %v215
    %v255 = vpack.c.b16 %v219, %v216
    %v256 = vpack.c.b16 %v223, %v220
    %v257 = vpack.c.b16 %v224, %v221
    %v258 = vpack.c.b16 %v225, %v222
    %v259 = vpack.c.b16 %v229, %v226
    %v260 = vpack.c.b16 %v230, %v227
    %v261 = vpack.c.b16 %v231, %v228
    %v262 = vpack.c.b16 %v235, %v232
    %v263 = vpack.c.b16 %v236, %v233
    %v264 = vpack.c.b16 %v237, %v234
    %v265 = vpack.c.b16 %v241, %v238
    %v266 = vpack.c.b16 %v242, %v239
    %v267 = vpack.c.b16 %v243, %v240
    %292 = vmatpush.bf16.msra.mxu0 %v265
    %293 = vmatpush.bf16.msra.mxu0 %v262
    %294 = vmatpush.bf16.msra.mxu0 %v259
    %295 = vmatpush.bf16.msra.mxu0 %v256
    %296 = vmatpush.bf16.msra.mxu0 %v253
    %297 = vmatpush.bf16.msra.mxu0 %v250
    %298 = vmatpush.bf16.msra.mxu0 %v247
    %299 = vmatpush.bf16.msra.mxu0 %v244
    %300 = vmatmul.bf16.gmra.mxu0 %v123
    %v301 = vpop.f32.mrf.mxu0
    %v302 = vadd.f32 %v158, %v301
    %v303 = vpop.f32.mrf.mxu0
    %v304 = vadd.f32 %v158, %v303
    %305 = vdwg.mxu0
    %306 = vmatpush.bf16.msra.mxu0 %v266
    %307 = vmatpush.bf16.msra.mxu0 %v263
    %308 = vmatpush.bf16.msra.mxu0 %v260
    %309 = vmatpush.bf16.msra.mxu0 %v257
    %310 = vmatpush.bf16.msra.mxu0 %v254
    %311 = vmatpush.bf16.msra.mxu0 %v251
    %312 = vmatpush.bf16.msra.mxu0 %v248
    %313 = vmatpush.bf16.msra.mxu0 %v245
    %314 = vmatmul.bf16.gmra.mxu0 %v123
    %v315 = vpop.f32.mrf.mxu0
    %v316 = vadd.f32 %v159, %v315
    %v317 = vpop.f32.mrf.mxu0
    %v318 = vadd.f32 %v159, %v317
    %319 = vdwg.mxu0
    %320 = vmatpush.bf16.msra.mxu0 %v267
    %321 = vmatpush.bf16.msra.mxu0 %v264
    %322 = vmatpush.bf16.msra.mxu0 %v261
    %323 = vmatpush.bf16.msra.mxu0 %v258
    %324 = vmatpush.bf16.msra.mxu0 %v255
    %325 = vmatpush.bf16.msra.mxu0 %v252
    %326 = vmatpush.bf16.msra.mxu0 %v249
    %327 = vmatpush.bf16.msra.mxu0 %v246
    %328 = vmatmul.bf16.gmra.mxu0 %v123
    %v329 = vpop.f32.mrf.mxu0
    %v330 = vadd.f32 %v160, %v329
    %v331 = vpop.f32.mrf.mxu0
    %v332 = vadd.f32 %v160, %v331
    %333 = vdwg.mxu0
    %v334 = vmul.f32 %v302, 0.088388346
    %v335 = vmul.f32 %v304, 0.088388346
    %v336 = vpack.c.bf16 %v334, %v334
    %v337 = vpack.c.bf16 %v335, %v335
    %v338 = vpack.c.bf16 %v316, %v316
    %v339 = vpack.c.bf16 %v318, %v318
    %v340 = vpack.c.bf16 %v330, %v330
    %v341 = vpack.c.bf16 %v332, %v332
    %342 = vmatpush.bf16.xpose.msra.mxu0 0
    %343 = vmatpush.bf16.xpose.msra.mxu0 0
    %344 = vmatpush.bf16.xpose.msra.mxu0 0
    %345 = vmatpush.bf16.xpose.msra.mxu0 0
    %346 = vmatpush.bf16.xpose.msra.mxu0 0
    %347 = vmatpush.bf16.xpose.msra.mxu0 0
    %348 = vmatpush.bf16.xpose.msra.mxu0 0
    %349 = vmatpush.bf16.xpose.msra.mxu0 %v338
    %350 = vmatmul.bf16.gmra.mxu0 %v336
    %v351 = vpop.f32.mrf.mxu0
    %v352 = vadd.f32 0.0, %v351
    %v353 = vpop.f32.mrf.mxu0
    %354 = vdwg.mxu0
    %355 = vmatpush.bf16.xpose.msra.mxu0 0
    %356 = vmatpush.bf16.xpose.msra.mxu0 0
    %357 = vmatpush.bf16.xpose.msra.mxu0 0
    %358 = vmatpush.bf16.xpose.msra.mxu0 0
    %359 = vmatpush.bf16.xpose.msra.mxu0 0
    %360 = vmatpush.bf16.xpose.msra.mxu0 0
    %361 = vmatpush.bf16.xpose.msra.mxu0 0
    %362 = vmatpush.bf16.xpose.msra.mxu0 %v339
    %363 = vmatmul.bf16.gmra.mxu0 %v337
    %v364 = vpop.f32.mrf.mxu0
    %v365 = vadd.f32 0.0, %v364
    %v366 = vpop.f32.mrf.mxu0
    %367 = vdwg.mxu0
    %v368 = vlaneseq
    %v369 = vshrl.u32 %v368, 7
    %v370 = vlaneseq
    %v371 = vand.u32 %v370, 127
    %vm372 = vcmp.le.s32.totalorder %v371, %v369
    %v373 = vsel %vm372, 1, 0
    %vm374 = vcmp.eq.s32.totalorder %v373, 1
    %v375 = vsel %vm374, %v352, -1e+09
    %v376 = vsel %vm374, %v365, -1e+09
    %vm377 = vcmask 64512
    %v378 = vsel %vm377, %v375, -inf
    %379 = vmax.xlane.f32.xlu0 %v378
    %v380 = vpop.xlane.xlu0 %379
    %v381 = vsel %vm377, %v376, -inf
    %382 = vmax.xlane.f32.xlu0 %v381
    %v383 = vpop.xlane.xlu0 %382
    %v384 = vsub.f32 %v375, %v380
    %v385 = vsub.f32 %v376, %v383
    %v386 = vmul.f32 %v384, 1.442695
    %v387 = vpow.pop %v386
    %v388 = vmul.f32 %v385, 1.442695
    %v389 = vpow.pop %v388
    %v390 = vsel %vm377, %v387, 0.0
    %391 = vadd.xlane.f32.xlu0 %v390
    %v392 = vpop.xlane.xlu0 %391
    %v393 = vsel %vm377, %v389, 0.0
    %394 = vadd.xlane.f32.xlu0 %v393
    %v395 = vpop.xlane.xlu0 %394
    %v396 = vrcp.pop %v392
    %v397 = vrcp.pop %v395
    %v398 = vmul.f32 %v387, %v396
    %v399 = vmul.f32 %v389, %v397
    %v400 = vpack.c.bf16 %v398, %v398
    %v401 = vpack.c.bf16 %v399, %v399
    %v403 = vsel %vm377, %v400, 0
    %vm405 = vcmask 1043456
    %v407 = vsel %vm405, %v340, 0
    %409 = vmatpush.bf16.msra.mxu0 0
    %410 = vmatpush.bf16.msra.mxu0 0
    %411 = vmatpush.bf16.msra.mxu0 0
    %412 = vmatpush.bf16.msra.mxu0 0
    %413 = vmatpush.bf16.msra.mxu0 0
    %414 = vmatpush.bf16.msra.mxu0 0
    %415 = vmatpush.bf16.msra.mxu0 0
    %416 = vmatpush.bf16.msra.mxu0 %v407
    %417 = vmatmul.bf16.gmra.mxu0 %v403
    %v418 = vpop.f32.mrf.mxu0
    %v419 = vadd.f32 0.0, %v418
    %v420 = vpop.f32.mrf.mxu0
    %421 = vdwg.mxu0
    %v423 = vsel %vm377, %v401, 0
    %v426 = vsel %vm405, %v341, 0
    %428 = vmatpush.bf16.msra.mxu0 0
    %429 = vmatpush.bf16.msra.mxu0 0
    %430 = vmatpush.bf16.msra.mxu0 0
    %431 = vmatpush.bf16.msra.mxu0 0
    %432 = vmatpush.bf16.msra.mxu0 0
    %433 = vmatpush.bf16.msra.mxu0 0
    %434 = vmatpush.bf16.msra.mxu0 0
    %435 = vmatpush.bf16.msra.mxu0 %v426
    %436 = vmatmul.bf16.gmra.mxu0 %v423
    %v437 = vpop.f32.mrf.mxu0
    %v438 = vadd.f32 0.0, %v437
    %v439 = vpop.f32.mrf.mxu0
    %440 = vdwg.mxu0
    %v441 = vpack.c.bf16 %v438, %v419
    %v442 = vld [vmem:[#allocation7] sm:$0xf]
    %v443 = vld [vmem:[#allocation7 + $0x4] sm:$0xf]
    %v444 = vld [vmem:[#allocation7 + $0x8] sm:$0xf]
    %v445 = vld [vmem:[#allocation7 + $0xc] sm:$0xf]
    %v446 = vld [vmem:[#allocation7 + $0x10] sm:$0xf]
    %v447 = vld [vmem:[#allocation7 + $0x14] sm:$0xf]
    %v448 = vld [vmem:[#allocation7 + $0x18] sm:$0xf]
    %v449 = vld [vmem:[#allocation7 + $0x1c] sm:$0xf]
    %v450 = vld [vmem:[#allocation7 + $0x20] sm:$0xf]
    %v451 = vld [vmem:[#allocation7 + $0x24] sm:$0xf]
    %v452 = vld [vmem:[#allocation7 + $0x28] sm:$0xf]
    %v453 = vld [vmem:[#allocation7 + $0x2c] sm:$0xf]
    %v454 = vld [vmem:[#allocation7 + $0x30] sm:$0xf]
    %v455 = vld [vmem:[#allocation7 + $0x34] sm:$0xf]
    %v456 = vld [vmem:[#allocation7 + $0x38] sm:$0xf]
    %v457 = vld [vmem:[#allocation7 + $0x3c] sm:$0xf]
    %v458 = vperm.slane %v122, 0
    %v475 = vunpack.c.l.b16 %v442
    %v476 = vunpack.c.l.b16 %v443
    %v477 = vunpack.c.l.b16 %v444
    %v478 = vunpack.c.l.b16 %v445
    %v479 = vunpack.c.l.b16 %v446
    %v480 = vunpack.c.l.b16 %v447
    %v481 = vunpack.c.l.b16 %v448
    %v482 = vunpack.c.l.b16 %v449
    %v483 = vunpack.c.l.b16 %v450
    %v484 = vunpack.c.l.b16 %v451
    %v485 = vunpack.c.l.b16 %v452
    %v486 = vunpack.c.l.b16 %v453
    %v487 = vunpack.c.l.b16 %v454
    %v488 = vunpack.c.l.b16 %v455
    %v489 = vunpack.c.l.b16 %v456
    %v490 = vunpack.c.l.b16 %v457
    %v491 = vpack.c.b16 %v476, %v475
    %v492 = vpack.c.b16 %v478, %v477
    %v493 = vpack.c.b16 %v480, %v479
    %v494 = vpack.c.b16 %v482, %v481
    %v495 = vpack.c.b16 %v484, %v483
    %v496 = vpack.c.b16 %v486, %v485
    %v497 = vpack.c.b16 %v488, %v487
    %v498 = vpack.c.b16 %v490, %v489
    %507 = vmatpush.bf16.msra.mxu0 %v498
    %508 = vmatpush.bf16.msra.mxu0 %v497
    %509 = vmatpush.bf16.msra.mxu0 %v496
    %510 = vmatpush.bf16.msra.mxu0 %v495
    %511 = vmatpush.bf16.msra.mxu0 %v494
    %512 = vmatpush.bf16.msra.mxu0 %v493
    %513 = vmatpush.bf16.msra.mxu0 %v492
    %514 = vmatpush.bf16.msra.mxu0 %v491
    %515 = vmatmul.bf16.gmra.mxu0 %v441
    %v516 = vpop.f32.mrf.mxu0
    %v517 = vadd.f32 %v458, %v516
    %v518 = vpop.f32.mrf.mxu0
    %v519 = vadd.f32 %v458, %v518
    %520 = vdwg.mxu0
    %v521 = vadd.f32 %v517, %v120
    %v522 = vadd.f32 %v519, %v121
    %523 = vadd.xlane.f32.xlu0 %v521
    %v524 = vpop.xlane.xlu0 %523
    %525 = vadd.xlane.f32.xlu0 %v522
    %v526 = vpop.xlane.xlu0 %525
    %v527 = vrcp.pop 128.0
    %v528 = vmul.f32 128.0, %v527
    %v529 = vsub.f32 1.0, %v528
    %v530 = vmul.f32 %v527, %v529
    %v531 = vadd.f32 %v527, %v530
    %vm532 = vweird.f32 %v527
    %v533 = vsel %vm532, %v527, %v531
    %v534 = vmul.f32 %v524, %v533
    %v535 = vmul.f32 %v526, %v533
    %v536 = vsub.f32 %v521, %v534
    %v537 = vsub.f32 %v522, %v535
    %v538 = vmul.f32 %v536, %v536
    %v539 = vmul.f32 %v537, %v537
    %540 = vadd.xlane.f32.xlu0 %v538
    %v541 = vpop.xlane.xlu0 %540
    %542 = vadd.xlane.f32.xlu0 %v539
    %v543 = vpop.xlane.xlu0 %542
    %v544 = vmul.f32 %v541, %v533
    %v545 = vmul.f32 %v543, %v533
    %v546 = vadd.f32 %v544, 1e-05
    %v547 = vadd.f32 %v545, 1e-05
    %v548 = vrsqrt.pop %v546
    %v549 = vmul.f32 %v548, %v546
    %v550 = vmul.f32 %v549, %v548
    %v551 = vmul.f32 0.5, %v550
    %v552 = vsub.f32 1.5, %v551
    %v553 = vmul.f32 %v548, %v552
    %vm554 = vweird.f32 %v546
    %vm555 = vweird.f32 %v548
    %vm556 = vmor %vm554, %vm555
    %v557 = vsel %vm556, %v548, %v553
    %v558 = vrsqrt.pop %v547
    %v559 = vmul.f32 %v558, %v547
    %v560 = vmul.f32 %v559, %v558
    %v561 = vmul.f32 0.5, %v560
    %v562 = vsub.f32 1.5, %v561
    %v563 = vmul.f32 %v558, %v562
    %vm564 = vweird.f32 %v547
    %vm565 = vweird.f32 %v558
    %vm566 = vmor %vm564, %vm565
    %v567 = vsel %vm566, %v558, %v563
    %v568 = vmul.f32 %v536, %v557
    %v569 = vmul.f32 %v537, %v567
    %v570 = vperm.slane %v122, 1
    %v571 = vmul.f32 %v568, %v570
    %v572 = vmul.f32 %v569, %v570
    %v573 = vperm.slane %v122, 2
    %v574 = vadd.f32 %v571, %v573
    %v575 = vadd.f32 %v572, %v573
    %v576 = vpack.c.bf16 %v575, %v574
    %v577 = vld [vmem:[#allocation8] sm:$0xf]
    %v578 = vld [vmem:[#allocation8 + $0x4] sm:$0xf]
    %v579 = vld [vmem:[#allocation8 + $0x8] sm:$0xf]
    %v580 = vld [vmem:[#allocation8 + $0xc] sm:$0xf]
    %v581 = vld [vmem:[#allocation8 + $0x10] sm:$0xf]
    %v582 = vld [vmem:[#allocation8 + $0x14] sm:$0xf]
    %v583 = vld [vmem:[#allocation8 + $0x18] sm:$0xf]
    %v584 = vld [vmem:[#allocation8 + $0x1c] sm:$0xf]
    %v585 = vld [vmem:[#allocation8 + $0x20] sm:$0xf]
    %v586 = vld [vmem:[#allocation8 + $0x24] sm:$0xf]
    %v587 = vld [vmem:[#allocation8 + $0x28] sm:$0xf]
    %v588 = vld [vmem:[#allocation8 + $0x2c] sm:$0xf]
    %v589 = vld [vmem:[#allocation8 + $0x30] sm:$0xf]
    %v590 = vld [vmem:[#allocation8 + $0x34] sm:$0xf]
    %v591 = vld [vmem:[#allocation8 + $0x38] sm:$0xf]
    %v592 = vld [vmem:[#allocation8 + $0x3c] sm:$0xf]
    %v593 = vperm.slane %v122, 3
    %v610 = vunpack.c.l.b16 %v577
    %v611 = vunpack.c.l.b16 %v578
    %v612 = vunpack.c.l.b16 %v579
    %v613 = vunpack.c.l.b16 %v580
    %v614 = vunpack.c.l.b16 %v581
    %v615 = vunpack.c.l.b16 %v582
    %v616 = vunpack.c.l.b16 %v583
    %v617 = vunpack.c.l.b16 %v584
    %v618 = vunpack.c.l.b16 %v585
    %v619 = vunpack.c.l.b16 %v586
    %v620 = vunpack.c.l.b16 %v587
    %v621 = vunpack.c.l.b16 %v588
    %v622 = vunpack.c.l.b16 %v589
    %v623 = vunpack.c.l.b16 %v590
    %v624 = vunpack.c.l.b16 %v591
    %v625 = vunpack.c.l.b16 %v592
    %v626 = vpack.c.b16 %v611, %v610
    %v627 = vpack.c.b16 %v613, %v612
    %v628 = vpack.c.b16 %v615, %v614
    %v629 = vpack.c.b16 %v617, %v616
    %v630 = vpack.c.b16 %v619, %v618
    %v631 = vpack.c.b16 %v621, %v620
    %v632 = vpack.c.b16 %v623, %v622
    %v633 = vpack.c.b16 %v625, %v624
    %642 = vmatpush.bf16.msra.mxu0 %v633
    %643 = vmatpush.bf16.msra.mxu0 %v632
    %644 = vmatpush.bf16.msra.mxu0 %v631
    %645 = vmatpush.bf16.msra.mxu0 %v630
    %646 = vmatpush.bf16.msra.mxu0 %v629
    %647 = vmatpush.bf16.msra.mxu0 %v628
    %648 = vmatpush.bf16.msra.mxu0 %v627
    %649 = vmatpush.bf16.msra.mxu0 %v626
    %650 = vmatmul.bf16.gmra.mxu0 %v576
    %v651 = vpop.f32.mrf.mxu0
    %v652 = vadd.f32 %v593, %v651
    %v653 = vpop.f32.mrf.mxu0
    %v654 = vadd.f32 %v593, %v653
    %655 = vdwg.mxu0
    %v656 = vmul.f32 %v652, 0.5
    %v657 = vmul.f32 %v654, 0.5
    %v658 = vmul.f32 %v652, 0.044715
    %v659 = vmul.f32 %v654, 0.044715
    %v660 = vmul.f32 %v658, %v652
    %v661 = vmul.f32 %v659, %v654
    %v662 = vmul.f32 %v660, %v652
    %v663 = vmul.f32 %v661, %v654
    %v664 = vadd.f32 %v652, %v662
    %v665 = vadd.f32 %v654, %v663
    %v666 = vmul.f32 %v664, 0.7978846
    %v667 = vmul.f32 %v665, 0.7978846
    %v668 = vtanh.pop %v666
    %v669 = vtanh.pop %v667
    %v670 = vadd.f32 %v668, 1.0
    %v671 = vadd.f32 %v669, 1.0
    %v672 = vmul.f32 %v656, %v670
    %v673 = vmul.f32 %v657, %v671
    %v674 = vpack.c.bf16 %v673, %v672
    %v675 = vld [vmem:[#allocation10] sm:$0xf]
    %v676 = vld [vmem:[#allocation10 + $0x4] sm:$0xf]
    %v677 = vld [vmem:[#allocation10 + $0x8] sm:$0xf]
    %v678 = vld [vmem:[#allocation10 + $0xc] sm:$0xf]
    %v679 = vld [vmem:[#allocation10 + $0x10] sm:$0xf]
    %v680 = vld [vmem:[#allocation10 + $0x14] sm:$0xf]
    %v681 = vld [vmem:[#allocation10 + $0x18] sm:$0xf]
    %v682 = vld [vmem:[#allocation10 + $0x1c] sm:$0xf]
    %v683 = vld [vmem:[#allocation10 + $0x20] sm:$0xf]
    %v684 = vld [vmem:[#allocation10 + $0x24] sm:$0xf]
    %v685 = vld [vmem:[#allocation10 + $0x28] sm:$0xf]
    %v686 = vld [vmem:[#allocation10 + $0x2c] sm:$0xf]
    %v687 = vld [vmem:[#allocation10 + $0x30] sm:$0xf]
    %v688 = vld [vmem:[#allocation10 + $0x34] sm:$0xf]
    %v689 = vld [vmem:[#allocation10 + $0x38] sm:$0xf]
    %v690 = vld [vmem:[#allocation10 + $0x3c] sm:$0xf]
    %v691 = vperm.slane %v122, 4
    %v708 = vunpack.c.l.b16 %v675
    %v709 = vunpack.c.l.b16 %v676
    %v710 = vunpack.c.l.b16 %v677
    %v711 = vunpack.c.l.b16 %v678
    %v712 = vunpack.c.l.b16 %v679
    %v713 = vunpack.c.l.b16 %v680
    %v714 = vunpack.c.l.b16 %v681
    %v715 = vunpack.c.l.b16 %v682
    %v716 = vunpack.c.l.b16 %v683
    %v717 = vunpack.c.l.b16 %v684
    %v718 = vunpack.c.l.b16 %v685
    %v719 = vunpack.c.l.b16 %v686
    %v720 = vunpack.c.l.b16 %v687
    %v721 = vunpack.c.l.b16 %v688
    %v722 = vunpack.c.l.b16 %v689
    %v723 = vunpack.c.l.b16 %v690
    %v724 = vpack.c.b16 %v709, %v708
    %v725 = vpack.c.b16 %v711, %v710
    %v726 = vpack.c.b16 %v713, %v712
    %v727 = vpack.c.b16 %v715, %v714
    %v728 = vpack.c.b16 %v717, %v716
    %v729 = vpack.c.b16 %v719, %v718
    %v730 = vpack.c.b16 %v721, %v720
    %v731 = vpack.c.b16 %v723, %v722
    %740 = vmatpush.bf16.msra.mxu0 %v731
    %741 = vmatpush.bf16.msra.mxu0 %v730
    %742 = vmatpush.bf16.msra.mxu0 %v729
    %743 = vmatpush.bf16.msra.mxu0 %v728
    %744 = vmatpush.bf16.msra.mxu0 %v727
    %745 = vmatpush.bf16.msra.mxu0 %v726
    %746 = vmatpush.bf16.msra.mxu0 %v725
    %747 = vmatpush.bf16.msra.mxu0 %v724
    %748 = vmatmul.bf16.gmra.mxu0 %v674
    %v749 = vpop.f32.mrf.mxu0
    %v750 = vadd.f32 %v691, %v749
    %v751 = vpop.f32.mrf.mxu0
    %v752 = vadd.f32 %v691, %v751
    %753 = vdwg.mxu0
    %v754 = vmul.f32 %v750, 0.5
    %v755 = vmul.f32 %v752, 0.5
    %v756 = vmul.f32 %v750, 0.044715
    %v757 = vmul.f32 %v752, 0.044715
    %v758 = vmul.f32 %v756, %v750
    %v759 = vmul.f32 %v757, %v752
    %v760 = vmul.f32 %v758, %v750
    %v761 = vmul.f32 %v759, %v752
    %v762 = vadd.f32 %v750, %v760
    %v763 = vadd.f32 %v752, %v761
    %v764 = vmul.f32 %v762, 0.7978846
    %v765 = vmul.f32 %v763, 0.7978846
    %v766 = vtanh.pop %v764
    %v767 = vtanh.pop %v765
    %v768 = vadd.f32 %v766, 1.0
    %v769 = vadd.f32 %v767, 1.0
    %v770 = vmul.f32 %v754, %v768
    %v771 = vmul.f32 %v755, %v769
    %v772 = vadd.f32 %v770, %v521
    %v773 = vadd.f32 %v771, %v522
    %774 = vst [vmem:[#allocation13] sm:$0xff] %v772
    %775 = vst [vmem:[#allocation13 + $0x8] sm:$0xff] %v773
    // Predicated region
    $region54: #{tpu_custom_call.1} parent=1 // pred_check
      _
    $region55: #{tpu_custom_call.1} parent=1 // pred_check_branch
      %777 = sbr.rel (0) target = $region57
    $region56: #{tpu_custom_call.1} parent=1 // pred_region
      %779 = vsyncadd [#allocation4], 0
      %s780 = sshll.u32 [#allocation13], 4
      %s781 = int_to_ptr.vmem [resolvable:$true] %s780
      %s782 = sshll.u32 %s7, 4
      %s783 = int_to_ptr.hbm [resolvable:$true] %s782
      %788 = dma.vmem_to_hbm [thread:$0]  %s781, 256, %s783, [#allocation4], 128, 128, 8
    $region57: #{tpu_custom_call.1} parent=1 // pred_fallthru
      _
    // Predicated region
    $region58: #{tpu_custom_call.1} parent=1 // pred_check
      _
    $region59: #{tpu_custom_call.1} parent=1 // pred_check_branch
      %790 = sbr.rel (0) target = $region61
    $region60: #{tpu_custom_call.1} parent=1 // pred_region
      %792 = dma.done [#allocation4], 256
    $region61: #{tpu_custom_call.1} parent=1 // pred_fallthru
      _
    %793 = vsyncpa [#allocation3], 1
    %794 = vsyncpa [#allocation6], 1
    %795 = vsyncpa [#allocation9], 1
    %796 = vsyncpa [#allocation12], 1
    %797 = vsyncpa [#allocation4], 1

</llo_original>
